<compile_context>
chip_gen: v6e
topology: v6e:2x2x1
jax: 0.10.0
libtpu: 0.0.40
codegen_flags: <defaults>
</compile_context>

<pallas_src>
import functools

import jax
import jax.numpy as jnp
import numpy as np
from jax import lax
from jax.experimental import pallas as pl
from jax.experimental.pallas import tpu as pltpu


def _round_up(x, m):
    return (x + m - 1) // m * m


def _pick_h_tile(h):
    # Multiple of 8, big enough to feed the MXU M dim, small enough that
    # double-buffered in/out blocks stay well under ~40 MiB at 256x256x64.
    for ht in (64, 32, 16, 8):
        if h % ht == 0:
            return ht
    return h


def _pick_spatial_group(w, c_in, target_k=256):
    # Largest divisor of W with G*C_in <= target_k (native MXU contraction).
    for g in range(w, 0, -1):
        if w % g == 0 and g * c_in <= target_k:
            return g
    return 1


def _vmem_limit_bytes():
    # Generation-aware VMEM budget: ~60% of physical, capped at 64 MiB.
    try:
        cap = pltpu.get_tpu_info().vmem_capacity_bytes
    except Exception:
        cap = 64 * 1024 * 1024          # conservative fallback (v7x physical)
    return int(min(cap * 0.6, 64 * 1024 * 1024))


def _sepconv_kernel(x_ref, w_ref, shift_ref, m_ref, pb_ref, o_ref, *,
                    c_in, n_groups, group_w):
    # x_ref:     (1, 1, Ht+2, L_in)    zero-padded input tile (2-row halo);
    #                                  lanes fused as (W+2)*C_in, lane-padded.
    # w_ref:     (9, V)                depthwise 3x3 weights * BN scale, V=W*C_in.
    # shift_ref: (1, V)                folded BN shift.
    # m_ref:     (G*C_in, G*C_out)     block-diagonal pointwise matrix (bf16).
    # pb_ref:    (1, L_out_pad)        pointwise bias, zero-padded to 128 mult.
    # o_ref:     (1, 1, Ht, L_out_pad) lane-dense output tile.
    ht = o_ref.shape[2]
    l_out_pad = o_ref.shape[3]
    v = w_ref.shape[1]

    w = w_ref[...]                                   # (9, V) hoisted
    xp = x_ref[0, 0]                                 # (Ht+2, L_in)

    # kx lane shifts hoisted out of the ky loop: 3 cross-lane slices total.
    shifted = [xp[:, kx * c_in:kx * c_in + v] for kx in range(3)]

    # 3x3 depthwise conv: 9 sublane-band taps accumulated with VPU FMAs.
    acc = None
    for ky in range(3):
        for kx in range(3):
            term = shifted[kx][ky:ky + ht, :] * w[ky * 3 + kx, :]
            acc = term if acc is None else acc + term

    # BatchNorm shift (scale already folded into the weights).
    y = acc + shift_ref[0, :]

    # Mish = y * tanh(softplus(y)) = y * ((1+e)^2-1)/((1+e)^2+1), e = exp(y).
    # One exp + one approx reciprocal on the EUP; clamping the exp argument
    # keeps everything finite (for y >= 20 the ratio is 1.0 to f32 precision).
    e = jnp.exp(jnp.minimum(y, 20.0))
    s = (1.0 + e) * (1.0 + e)
    act = y * (s - 1.0) * pl.reciprocal(s + 1.0, approx=True)

    # Grouped block-diagonal 1x1 conv on the MXU (bf16 in, f32 accumulate).
    act16 = act.astype(jnp.bfloat16)
    m = m_ref[...]
    gk = group_w * c_in
    outs = []
    for grp in range(n_groups):
        a_g = act16[:, grp * gk:(grp + 1) * gk]
        outs.append(jnp.dot(a_g, m, preferred_element_type=jnp.float32))
    out = outs[0] if n_groups == 1 else jnp.concatenate(outs, axis=-1)

    pad = l_out_pad - out.shape[-1]
    if pad:  # only taken when W*C_out is not already a multiple of 128
        out = jnp.pad(out, ((0, 0), (0, pad)))
    out = out + pb_ref[0, :]
    o_ref[...] = out.reshape(1, 1, ht, l_out_pad).astype(o_ref.dtype)


@jax.jit
def separable_convolution(x_nchw, dw_w, bn_gamma, bn_beta, bn_mean, bn_var,
                          pw_w, pw_b, eps=1e-5):
    """x_nchw: (N, C_in, H, W) float32. Returns (N, C_out, H, W)."""
    N, C_in, H, W = x_nchw.shape
    C_out = pw_w.shape[0]
    Wp = W + 2                               # padded width (padding=1, k=3)
    V = W * C_in                             # valid fused input lanes
    L_in = _round_up(Wp * C_in, 128)         # lane-padded fused input width
    L_out = W * C_out
    L_out_pad = _round_up(L_out, 128)        # lane-dense (unmasked vst) output

    Ht = _pick_h_tile(H)
    T = H // Ht
    G = _pick_spatial_group(W, C_in)
    n_groups = W // G

    # ---- Input prep (one XLA layout pass): NCHW -> NHWC -> spatial pad ->
    #      fuse (W,C) lanes -> lane pad -> overlapping H tiles with 2-row halo.
    x = jnp.transpose(x_nchw, (0, 2, 3, 1))
    x = jnp.pad(x, ((0, 0), (1, 1), (1, 1), (0, 0)))
    x = x.reshape(N, H + 2, Wp * C_in)
    x = jnp.pad(x, ((0, 0), (0, 0), (0, L_in - Wp * C_in)))
    if T == 1:
        x_t = x[:, None]                                     # (N, 1, H+2, L_in)
    else:
        x_t = jnp.stack([x[:, t * Ht:t * Ht + Ht + 2, :] for t in range(T)],
                        axis=1)                              # (N, T, Ht+2, L_in)

    # ---- Fold BN (eval mode) into depthwise weights + per-channel shift.
    inv_std = 1.0 / jnp.sqrt(bn_var + eps)
    scale = bn_gamma * inv_std                               # (C_in,)
    shift = bn_beta - bn_mean * scale                        # (C_in,)
    dw = dw_w[:, 0, :, :] * scale[:, None, None]             # (C_in, 3, 3)
    dw = jnp.transpose(dw, (1, 2, 0)).reshape(9, C_in)       # (9, C_in)
    w_fused = jnp.tile(dw, (1, W))                           # (9, W*C_in)
    shift_fused = jnp.tile(shift, W).reshape(1, V)           # (1, W*C_in)

    # ---- Grouped block-diagonal pointwise matrix (bf16) + fused bias.
    pw = jnp.transpose(pw_w[:, :, 0, 0], (1, 0))             # (C_in, C_out)
    m = jnp.einsum('xy,io->xiyo', jnp.eye(G, dtype=jnp.float32), pw)
    m = m.reshape(G * C_in, G * C_out).astype(jnp.bfloat16)  # (G*C_in, G*C_out)
    pb_fused = jnp.pad(jnp.tile(pw_b, W),
                       (0, L_out_pad - L_out)).reshape(1, L_out_pad)

    out_fused = pl.pallas_call(
        functools.partial(_sepconv_kernel, c_in=C_in,
                          n_groups=n_groups, group_w=G),
        out_shape=jax.ShapeDtypeStruct((N, T, Ht, L_out_pad), jnp.float32),
        grid_spec=pltpu.PrefetchScalarGridSpec(
            num_scalar_prefetch=0,
            grid=(N, T),
            in_specs=[
                pl.BlockSpec((1, 1, Ht + 2, L_in), lambda n, t: (n, t, 0, 0)),
                pl.BlockSpec((9, V), lambda n, t: (0, 0)),
                pl.BlockSpec((1, V), lambda n, t: (0, 0)),
                pl.BlockSpec((G * C_in, G * C_out), lambda n, t: (0, 0)),
                pl.BlockSpec((1, L_out_pad), lambda n, t: (0, 0)),
            ],
            out_specs=pl.BlockSpec((1, 1, Ht, L_out_pad),
                                   lambda n, t: (n, t, 0, 0)),
        ),
        compiler_params=pltpu.CompilerParams(
            dimension_semantics=("parallel", "arbitrary"),
            vmem_limit_bytes=_vmem_limit_bytes(),
        ),
    )(x_t, w_fused, shift_fused, m, pb_fused)

    # Un-fuse lanes and return to NCHW (single output-prep pass).
    out = out_fused.reshape(N, H, L_out_pad)[:, :, :L_out]
    out = out.reshape(N, H, W, C_out)
    return jnp.transpose(out, (0, 3, 1, 2))


def _reference(x_nchw, dw_w, bn_gamma, bn_beta, bn_mean, bn_var, pw_w, pw_b,
               eps=1e-5):
    """Pure-JAX f32 reference matching PyTorch semantics (eval-mode BN)."""
    C_in = x_nchw.shape[1]
    depth = lax.conv_general_dilated(
        x_nchw, dw_w, window_strides=(1, 1), padding=((1, 1), (1, 1)),
        feature_group_count=C_in,
        dimension_numbers=("NCHW", "OIHW", "NCHW"))
    scale = (bn_gamma / jnp.sqrt(bn_var + eps)).reshape(1, C_in, 1, 1)
    shift = (bn_beta - bn_mean * bn_gamma / jnp.sqrt(bn_var + eps)).reshape(
        1, C_in, 1, 1)
    y = depth * scale + shift
    act = y * jnp.tanh(jnp.logaddexp(y, 0.0))          # mish
    out = lax.conv_general_dilated(
        act, pw_w, window_strides=(1, 1), padding=((0, 0), (0, 0)),
        dimension_numbers=("NCHW", "OIHW", "NCHW"))
    return out + pw_b.reshape(1, -1, 1, 1)


if __name__ == "__main__":
    N, C_in, C_out, H, W = 2, 4, 8, 16, 16

    key = jax.random.PRNGKey(0)
    kx, kdw, kpw, kpb, kg, kb, km, kv = jax.random.split(key, 8)

    x = jax.random.normal(kx, (N, C_in, H, W), jnp.float32)
    # Depthwise Conv2d(C_in, C_in, 3, groups=C_in, bias=False): weight (C_in,1,3,3)
    dw_w = jax.random.normal(kdw, (C_in, 1, 3, 3), jnp.float32) * 0.2
    # BatchNorm2d(C_in) parameters / running stats (eval mode)
    bn_gamma = 1.0 + 0.1 * jax.random.normal(kg, (C_in,), jnp.float32)
    bn_beta = 0.1 * jax.random.normal(kb, (C_in,), jnp.float32)
    bn_mean = 0.05 * jax.random.normal(km, (C_in,), jnp.float32)
    bn_var = jax.random.uniform(kv, (C_in,), jnp.float32, 0.5, 1.5)
    # Pointwise Conv2d(C_in, C_out, 1): weight (C_out, C_in, 1, 1), bias (C_out,)
    pw_w = jax.random.normal(kpw, (C_out, C_in, 1, 1), jnp.float32) * 0.3
    pw_b = 0.1 * jax.random.normal(kpb, (C_out,), jnp.float32)

    out = separable_convolution(x, dw_w, bn_gamma, bn_beta, bn_mean, bn_var,
                                pw_w, pw_b)
    out = jax.block_until_ready(out)

    ref = _reference(x, dw_w, bn_gamma, bn_beta, bn_mean, bn_var, pw_w, pw_b)
    ref = jax.block_until_ready(ref)

    # Tolerance loosened vs the pure-f32 version because the pointwise matmul
    # runs with bf16 MXU operands (f32 accumulation), per the perf review.
    np.testing.assert_allclose(np.asarray(out), np.asarray(ref),
                               rtol=3e-2, atol=3e-2)
    print("KERNEL_OK")
</pallas_src>

<mosaic_0001>
module attributes {stable_mosaic.version = 11 : i64} {
  func.func @_sepconv_kernel(%arg0: i32, %arg1: i32, %arg2: memref<1x1x18x128xf32, #tpu.memory_space<vmem>>, %arg3: memref<9x64xf32, #tpu.memory_space<vmem>>, %arg4: memref<1x64xf32, #tpu.memory_space<vmem>>, %arg5: memref<64x128xbf16, #tpu.memory_space<vmem>>, %arg6: memref<1x128xf32, #tpu.memory_space<vmem>>, %arg7: memref<1x1x16x128xf32, #tpu.memory_space<vmem>>) attributes {dimension_semantics = [#tpu.dimension_semantics<parallel>, #tpu.dimension_semantics<arbitrary>], iteration_bounds = array<i64: 2, 1>, scalar_prefetch = 0 : i64, scratch_operands = 0 : i64, tpu.core_type = #tpu.core_type<tc>, window_params = [{transform_indices = @transform_0, window_bounds = array<i64: 1, 1, 18, 128>}, {pipeline_mode = #tpu.pipeline_mode<synchronous>, transform_indices = @transform_1, window_bounds = array<i64: 9, 64>}, {pipeline_mode = #tpu.pipeline_mode<synchronous>, transform_indices = @transform_2, window_bounds = array<i64: 1, 64>}, {pipeline_mode = #tpu.pipeline_mode<synchronous>, transform_indices = @transform_3, window_bounds = array<i64: 64, 128>}, {pipeline_mode = #tpu.pipeline_mode<synchronous>, transform_indices = @transform_4, window_bounds = array<i64: 1, 128>}, {transform_indices = @transform_5, window_bounds = array<i64: 1, 1, 16, 128>}]} {
    %c0 = arith.constant 0 : index
    %c0_0 = arith.constant 0 : index
    %0 = vector.load %arg3[%c0, %c0_0] : memref<9x64xf32, #tpu.memory_space<vmem>>, vector<9x64xf32>
    %c0_1 = arith.constant 0 : index
    %c0_2 = arith.constant 0 : index
    %c0_3 = arith.constant 0 : index
    %c0_4 = arith.constant 0 : index
    %1 = vector.load %arg2[%c0_1, %c0_2, %c0_3, %c0_4] : memref<1x1x18x128xf32, #tpu.memory_space<vmem>>, vector<1x1x18x128xf32>
    %2 = vector.shape_cast %1 : vector<1x1x18x128xf32> to vector<18x128xf32>
    %3 = vector.extract_strided_slice %2 {offsets = [0, 0], sizes = [18, 64], strides = [1, 1]} : vector<18x128xf32> to vector<18x64xf32>
    %4 = vector.extract_strided_slice %2 {offsets = [0, 4], sizes = [18, 64], strides = [1, 1]} : vector<18x128xf32> to vector<18x64xf32>
    %5 = vector.extract_strided_slice %2 {offsets = [0, 8], sizes = [18, 64], strides = [1, 1]} : vector<18x128xf32> to vector<18x64xf32>
    %6 = vector.extract_strided_slice %3 {offsets = [0, 0], sizes = [16, 64], strides = [1, 1]} : vector<18x64xf32> to vector<16x64xf32>
    %7 = vector.extract_strided_slice %0 {offsets = [0, 0], sizes = [1, 64], strides = [1, 1]} : vector<9x64xf32> to vector<1x64xf32>
    %8 = vector.shape_cast %7 : vector<1x64xf32> to vector<64xf32>
    %9 = vector.shape_cast %8 : vector<64xf32> to vector<1x64xf32>
    %10 = vector.broadcast %9 : vector<1x64xf32> to vector<16x64xf32>
    %11 = arith.mulf %6, %10 : vector<16x64xf32>
    %12 = vector.extract_strided_slice %4 {offsets = [0, 0], sizes = [16, 64], strides = [1, 1]} : vector<18x64xf32> to vector<16x64xf32>
    %13 = vector.extract_strided_slice %0 {offsets = [1, 0], sizes = [1, 64], strides = [1, 1]} : vector<9x64xf32> to vector<1x64xf32>
    %14 = vector.shape_cast %13 : vector<1x64xf32> to vector<64xf32>
    %15 = vector.shape_cast %14 : vector<64xf32> to vector<1x64xf32>
    %16 = vector.broadcast %15 : vector<1x64xf32> to vector<16x64xf32>
    %17 = arith.mulf %12, %16 : vector<16x64xf32>
    %18 = arith.addf %11, %17 : vector<16x64xf32>
    %19 = vector.extract_strided_slice %5 {offsets = [0, 0], sizes = [16, 64], strides = [1, 1]} : vector<18x64xf32> to vector<16x64xf32>
    %20 = vector.extract_strided_slice %0 {offsets = [2, 0], sizes = [1, 64], strides = [1, 1]} : vector<9x64xf32> to vector<1x64xf32>
    %21 = vector.shape_cast %20 : vector<1x64xf32> to vector<64xf32>
    %22 = vector.shape_cast %21 : vector<64xf32> to vector<1x64xf32>
    %23 = vector.broadcast %22 : vector<1x64xf32> to vector<16x64xf32>
    %24 = arith.mulf %19, %23 : vector<16x64xf32>
    %25 = arith.addf %18, %24 : vector<16x64xf32>
    %26 = vector.extract_strided_slice %3 {offsets = [1, 0], sizes = [16, 64], strides = [1, 1]} : vector<18x64xf32> to vector<16x64xf32>
    %27 = vector.extract_strided_slice %0 {offsets = [3, 0], sizes = [1, 64], strides = [1, 1]} : vector<9x64xf32> to vector<1x64xf32>
    %28 = vector.shape_cast %27 : vector<1x64xf32> to vector<64xf32>
    %29 = vector.shape_cast %28 : vector<64xf32> to vector<1x64xf32>
    %30 = vector.broadcast %29 : vector<1x64xf32> to vector<16x64xf32>
    %31 = arith.mulf %26, %30 : vector<16x64xf32>
    %32 = arith.addf %25, %31 : vector<16x64xf32>
    %33 = vector.extract_strided_slice %4 {offsets = [1, 0], sizes = [16, 64], strides = [1, 1]} : vector<18x64xf32> to vector<16x64xf32>
    %34 = vector.extract_strided_slice %0 {offsets = [4, 0], sizes = [1, 64], strides = [1, 1]} : vector<9x64xf32> to vector<1x64xf32>
    %35 = vector.shape_cast %34 : vector<1x64xf32> to vector<64xf32>
    %36 = vector.shape_cast %35 : vector<64xf32> to vector<1x64xf32>
    %37 = vector.broadcast %36 : vector<1x64xf32> to vector<16x64xf32>
    %38 = arith.mulf %33, %37 : vector<16x64xf32>
    %39 = arith.addf %32, %38 : vector<16x64xf32>
    %40 = vector.extract_strided_slice %5 {offsets = [1, 0], sizes = [16, 64], strides = [1, 1]} : vector<18x64xf32> to vector<16x64xf32>
    %41 = vector.extract_strided_slice %0 {offsets = [5, 0], sizes = [1, 64], strides = [1, 1]} : vector<9x64xf32> to vector<1x64xf32>
    %42 = vector.shape_cast %41 : vector<1x64xf32> to vector<64xf32>
    %43 = vector.shape_cast %42 : vector<64xf32> to vector<1x64xf32>
    %44 = vector.broadcast %43 : vector<1x64xf32> to vector<16x64xf32>
    %45 = arith.mulf %40, %44 : vector<16x64xf32>
    %46 = arith.addf %39, %45 : vector<16x64xf32>
    %47 = vector.extract_strided_slice %3 {offsets = [2, 0], sizes = [16, 64], strides = [1, 1]} : vector<18x64xf32> to vector<16x64xf32>
    %48 = vector.extract_strided_slice %0 {offsets = [6, 0], sizes = [1, 64], strides = [1, 1]} : vector<9x64xf32> to vector<1x64xf32>
    %49 = vector.shape_cast %48 : vector<1x64xf32> to vector<64xf32>
    %50 = vector.shape_cast %49 : vector<64xf32> to vector<1x64xf32>
    %51 = vector.broadcast %50 : vector<1x64xf32> to vector<16x64xf32>
    %52 = arith.mulf %47, %51 : vector<16x64xf32>
    %53 = arith.addf %46, %52 : vector<16x64xf32>
    %54 = vector.extract_strided_slice %4 {offsets = [2, 0], sizes = [16, 64], strides = [1, 1]} : vector<18x64xf32> to vector<16x64xf32>
    %55 = vector.extract_strided_slice %0 {offsets = [7, 0], sizes = [1, 64], strides = [1, 1]} : vector<9x64xf32> to vector<1x64xf32>
    %56 = vector.shape_cast %55 : vector<1x64xf32> to vector<64xf32>
    %57 = vector.shape_cast %56 : vector<64xf32> to vector<1x64xf32>
    %58 = vector.broadcast %57 : vector<1x64xf32> to vector<16x64xf32>
    %59 = arith.mulf %54, %58 : vector<16x64xf32>
    %60 = arith.addf %53, %59 : vector<16x64xf32>
    %61 = vector.extract_strided_slice %5 {offsets = [2, 0], sizes = [16, 64], strides = [1, 1]} : vector<18x64xf32> to vector<16x64xf32>
    %62 = vector.extract_strided_slice %0 {offsets = [8, 0], sizes = [1, 64], strides = [1, 1]} : vector<9x64xf32> to vector<1x64xf32>
    %63 = vector.shape_cast %62 : vector<1x64xf32> to vector<64xf32>
    %64 = vector.shape_cast %63 : vector<64xf32> to vector<1x64xf32>
    %65 = vector.broadcast %64 : vector<1x64xf32> to vector<16x64xf32>
    %66 = arith.mulf %61, %65 : vector<16x64xf32>
    %67 = arith.addf %60, %66 : vector<16x64xf32>
    %c0_5 = arith.constant 0 : index
    %c0_6 = arith.constant 0 : index
    %68 = vector.load %arg4[%c0_5, %c0_6] : memref<1x64xf32, #tpu.memory_space<vmem>>, vector<1x64xf32>
    %69 = vector.shape_cast %68 : vector<1x64xf32> to vector<64xf32>
    %70 = vector.shape_cast %69 : vector<64xf32> to vector<1x64xf32>
    %71 = vector.broadcast %70 : vector<1x64xf32> to vector<16x64xf32>
    %72 = arith.addf %67, %71 : vector<16x64xf32>
    %cst = arith.constant 2.000000e+01 : f32
    %73 = vector.broadcast %cst : f32 to vector<16x64xf32>
    %74 = arith.minimumf %72, %73 : vector<16x64xf32>
    %75 = math.exp %74 : vector<16x64xf32>
    %cst_7 = arith.constant 1.000000e+00 : f32
    %76 = vector.broadcast %cst_7 : f32 to vector<16x64xf32>
    %77 = arith.addf %76, %75 : vector<16x64xf32>
    %cst_8 = arith.constant 1.000000e+00 : f32
    %78 = vector.broadcast %cst_8 : f32 to vector<16x64xf32>
    %79 = arith.addf %78, %75 : vector<16x64xf32>
    %80 = arith.mulf %77, %79 : vector<16x64xf32>
    %cst_9 = arith.constant 1.000000e+00 : f32
    %81 = vector.broadcast %cst_9 : f32 to vector<16x64xf32>
    %82 = arith.subf %80, %81 : vector<16x64xf32>
    %83 = arith.mulf %72, %82 : vector<16x64xf32>
    %cst_10 = arith.constant 1.000000e+00 : f32
    %84 = vector.broadcast %cst_10 : f32 to vector<16x64xf32>
    %85 = arith.addf %80, %84 : vector<16x64xf32>
    %86 = tpu.reciprocal %85 {approx = true} : vector<16x64xf32> -> vector<16x64xf32>
    %87 = arith.mulf %83, %86 : vector<16x64xf32>
    %88 = arith.truncf %87 : vector<16x64xf32> to vector<16x64xbf16>
    %c0_11 = arith.constant 0 : index
    %c0_12 = arith.constant 0 : index
    %89 = vector.load %arg5[%c0_11, %c0_12] : memref<64x128xbf16, #tpu.memory_space<vmem>>, vector<64x128xbf16>
    %cst_13 = arith.constant dense<0.000000e+00> : vector<16x128xf32>
    %90 = tpu.matmul %88, %89, %cst_13 {dimension_numbers = #tpu.dot_dimension_numbers<[1], [0], [0], [1], [0, 0, 1, 1], [], []>} : vector<16x64xbf16>, vector<64x128xbf16>, vector<16x128xf32> -> vector<16x128xf32>
    %c0_14 = arith.constant 0 : index
    %c0_15 = arith.constant 0 : index
    %91 = vector.load %arg6[%c0_14, %c0_15] : memref<1x128xf32, #tpu.memory_space<vmem>>, vector<1x128xf32>
    %92 = vector.shape_cast %91 : vector<1x128xf32> to vector<128xf32>
    %93 = vector.shape_cast %92 : vector<128xf32> to vector<1x128xf32>
    %94 = vector.broadcast %93 : vector<1x128xf32> to vector<16x128xf32>
    %95 = arith.addf %90, %94 : vector<16x128xf32>
    %96 = vector.shape_cast %95 : vector<16x128xf32> to vector<1x1x16x128xf32>
    %c0_16 = arith.constant 0 : index
    %c0_17 = arith.constant 0 : index
    %c0_18 = arith.constant 0 : index
    %c0_19 = arith.constant 0 : index
    %97 = vector.load %arg7[%c0_16, %c0_17, %c0_18, %c0_19] : memref<1x1x16x128xf32, #tpu.memory_space<vmem>>, vector<1x1x16x128xf32>
    tpu.vector_store %arg7[%c0_16, %c0_17, %c0_18, %c0_19], %96 {strides = array<i32>} : memref<1x1x16x128xf32, #tpu.memory_space<vmem>>, vector<1x1x16x128xf32>,
    return
  }
  func.func @transform_0(%arg0: i32, %arg1: i32) -> (i32, i32, i32, i32) {
    %c0_i32 = arith.constant 0 : i32
    %c0_i32_0 = arith.constant 0 : i32
    %c0_i32_1 = arith.constant 0 : i32
    return %arg0, %arg1, %c0_i32, %c0_i32_0 : i32, i32, i32, i32
  }
  func.func @transform_1(%arg0: i32, %arg1: i32) -> (i32, i32) {
    %c0_i32 = arith.constant 0 : i32
    %c0_i32_0 = arith.constant 0 : i32
    %c0_i32_1 = arith.constant 0 : i32
    return %c0_i32, %c0_i32_0 : i32, i32
  }
  func.func @transform_2(%arg0: i32, %arg1: i32) -> (i32, i32) {
    %c0_i32 = arith.constant 0 : i32
    %c0_i32_0 = arith.constant 0 : i32
    %c0_i32_1 = arith.constant 0 : i32
    return %c0_i32, %c0_i32_0 : i32, i32
  }
  func.func @transform_3(%arg0: i32, %arg1: i32) -> (i32, i32) {
    %c0_i32 = arith.constant 0 : i32
    %c0_i32_0 = arith.constant 0 : i32
    %c0_i32_1 = arith.constant 0 : i32
    return %c0_i32, %c0_i32_0 : i32, i32
  }
  func.func @transform_4(%arg0: i32, %arg1: i32) -> (i32, i32) {
    %c0_i32 = arith.constant 0 : i32
    %c0_i32_0 = arith.constant 0 : i32
    %c0_i32_1 = arith.constant 0 : i32
    return %c0_i32, %c0_i32_0 : i32, i32
  }
  func.func @transform_5(%arg0: i32, %arg1: i32) -> (i32, i32, i32, i32) {
    %c0_i32 = arith.constant 0 : i32
    %c0_i32_0 = arith.constant 0 : i32
    %c0_i32_1 = arith.constant 0 : i32
    return %arg0, %arg1, %c0_i32, %c0_i32_0 : i32, i32, i32, i32
  }
}

</mosaic_0001>

<llo_original>
// kernel: tile.22
$region0: #{tile.22}
  %s0 = inlined_call_operand.vmem [shape: f32[16,4], index: 0, kind: input, shape index: {}]
  %s1 = inlined_call_operand.vmem [shape: f32[1,64], index: 1, kind: output, shape index: {}]
  $region1: #{tile.22} parent=0
    #allocation0 [shape = 'u8[4096]{0}', space=vmem, size = 0x1000, scoped, tag = 'scoped mem for output reshape']
    %v2 = vld [vmem:[%s0] sm:$0x1]
    %vm3 = vcmask 31744
    %4 = vst.msk [vmem:[#allocation0] sm:$0x1] %vm3, %v2
    %s5 = scalar_lea.vmem %s0, 15
    %v6 = vld [vmem:[%s5] sm:$0x1]
    %7 = vrot.lane.b32.xlu0 %v6, 60
    %v8 = vpop.permute.xlu0 %7
    %vm9 = vcmask 523744
    %10 = vst.msk [vmem:[#allocation0] sm:$0x1] %vm9, %v8
    %s11 = scalar_lea.vmem %s0, 14
    %v12 = vld [vmem:[%s11] sm:$0x1]
    %13 = vrot.lane.b32.xlu0 %v12, 56
    %v14 = vpop.permute.xlu0 %13
    %vm15 = vcmask 490944
    %16 = vst.msk [vmem:[#allocation0] sm:$0x1] %vm15, %v14
    %s17 = scalar_lea.vmem %s0, 13
    %v18 = vld [vmem:[%s17] sm:$0x1]
    %19 = vrot.lane.b32.xlu0 %v18, 52
    %v20 = vpop.permute.xlu0 %19
    %vm21 = vcmask 458144
    %22 = vst.msk [vmem:[#allocation0] sm:$0x1] %vm21, %v20
    %s23 = scalar_lea.vmem %s0, 12
    %v24 = vld [vmem:[%s23] sm:$0x1]
    %25 = vrot.lane.b32.xlu0 %v24, 48
    %v26 = vpop.permute.xlu0 %25
    %vm27 = vcmask 425344
    %28 = vst.msk [vmem:[#allocation0] sm:$0x1] %vm27, %v26
    %s29 = scalar_lea.vmem %s0, 11
    %v30 = vld [vmem:[%s29] sm:$0x1]
    %31 = vrot.lane.b32.xlu0 %v30, 44
    %v32 = vpop.permute.xlu0 %31
    %vm33 = vcmask 392544
    %34 = vst.msk [vmem:[#allocation0] sm:$0x1] %vm33, %v32
    %s35 = scalar_lea.vmem %s0, 10
    %v36 = vld [vmem:[%s35] sm:$0x1]
    %37 = vrot.lane.b32.xlu0 %v36, 40
    %v38 = vpop.permute.xlu0 %37
    %vm39 = vcmask 359744
    %40 = vst.msk [vmem:[#allocation0] sm:$0x1] %vm39, %v38
    %s41 = scalar_lea.vmem %s0, 9
    %v42 = vld [vmem:[%s41] sm:$0x1]
    %43 = vrot.lane.b32.xlu0 %v42, 36
    %v44 = vpop.permute.xlu0 %43
    %vm45 = vcmask 326944
    %46 = vst.msk [vmem:[#allocation0] sm:$0x1] %vm45, %v44
    %s47 = scalar_lea.vmem %s0, 8
    %v48 = vld [vmem:[%s47] sm:$0x1]
    %49 = vrot.lane.b32.xlu0 %v48, 32
    %v50 = vpop.permute.xlu0 %49
    %vm51 = vcmask 294144
    %52 = vst.msk [vmem:[#allocation0] sm:$0x1] %vm51, %v50
    %s53 = scalar_lea.vmem %s0, 7
    %v54 = vld [vmem:[%s53] sm:$0x1]
    %55 = vrot.lane.b32.xlu0 %v54, 28
    %v56 = vpop.permute.xlu0 %55
    %vm57 = vcmask 261344
    %58 = vst.msk [vmem:[#allocation0] sm:$0x1] %vm57, %v56
    %s59 = scalar_lea.vmem %s0, 6
    %v60 = vld [vmem:[%s59] sm:$0x1]
    %61 = vrot.lane.b32.xlu0 %v60, 24
    %v62 = vpop.permute.xlu0 %61
    %vm63 = vcmask 228544
    %64 = vst.msk [vmem:[#allocation0] sm:$0x1] %vm63, %v62
    %s65 = scalar_lea.vmem %s0, 5
    %v66 = vld [vmem:[%s65] sm:$0x1]
    %67 = vrot.lane.b32.xlu0 %v66, 20
    %v68 = vpop.permute.xlu0 %67
    %vm69 = vcmask 195744
    %70 = vst.msk [vmem:[#allocation0] sm:$0x1] %vm69, %v68
    %s71 = scalar_lea.vmem %s0, 4
    %v72 = vld [vmem:[%s71] sm:$0x1]
    %73 = vrot.lane.b32.xlu0 %v72, 16
    %v74 = vpop.permute.xlu0 %73
    %vm75 = vcmask 162944
    %76 = vst.msk [vmem:[#allocation0] sm:$0x1] %vm75, %v74
    %s77 = scalar_lea.vmem %s0, 3
    %v78 = vld [vmem:[%s77] sm:$0x1]
    %79 = vrot.lane.b32.xlu0 %v78, 12
    %v80 = vpop.permute.xlu0 %79
    %vm81 = vcmask 130144
    %82 = vst.msk [vmem:[#allocation0] sm:$0x1] %vm81, %v80
    %s83 = scalar_lea.vmem %s0, 2
    %v84 = vld [vmem:[%s83] sm:$0x1]
    %85 = vrot.lane.b32.xlu0 %v84, 8
    %v86 = vpop.permute.xlu0 %85
    %vm87 = vcmask 97344
    %88 = vst.msk [vmem:[#allocation0] sm:$0x1] %vm87, %v86
    %s89 = scalar_lea.vmem %s0, 1
    %v90 = vld [vmem:[%s89] sm:$0x1]
    %91 = vrot.lane.b32.xlu0 %v90, 4
    %v92 = vpop.permute.xlu0 %91
    %vm93 = vcmask 64544
    %94 = vst.msk [vmem:[#allocation0] sm:$0x1] %vm93, %v92
    %s96 = sshll.u32 1, 1
    %s97 = ssub.s32 %s96, 1
    %v99 = vld [vmem:[#allocation0] sm:%s97]
    %s100 = sshll.u32 1, 1
    %s101 = ssub.s32 %s100, 1
    %102 = vst [vmem:[%s1] sm:%s101] %v99

// kernel: tile.21
$region0: #{tile.21}
  #allocation0 [shape = 's32[1]{0}', space=sflag, size = 0x4, scoped, tag = 'scoped memory for tile.21']
  %s0 = inlined_call_operand.vmem [shape: f32[4], index: 0, kind: input, shape index: {}]
  %s1 = inlined_call_operand.vmem [shape: f32[16,4], index: 1, kind: output, shape index: {}]
  // Predicated region
  $region2: #{tile.21} parent=0 // pred_check
    _
  $region3: #{tile.21} parent=0 // pred_check_branch
    %3 = sbr.rel (0) target = $region5
  $region4: #{tile.21} parent=0 // pred_region
    _
  $region5: #{tile.21} parent=0 // pred_fallthru
    _
  %v4 = vld [vmem:[%s0] ss:$0 sm:$0xff]
  %5 = vst [vmem:[%s1] sm:$0xff] %v4
  %s6 = scalar_lea.vmem %s1, 8
  %7 = vst [vmem:[%s6] sm:$0xff] %v4

// kernel: tile.26
$region0: #{tile.26}
  #allocation0 [shape = 's32[1]{0}', space=sflag, size = 0x4, scoped, tag = 'scoped memory for tile.26']
  %s0 = inlined_call_operand.vmem [shape: f32[8], index: 0, kind: input, shape index: {}]
  %s1 = inlined_call_operand.vmem [shape: f32[16,8], index: 1, kind: output, shape index: {}]
  // Predicated region
  $region2: #{tile.26} parent=0 // pred_check
    _
  $region3: #{tile.26} parent=0 // pred_check_branch
    %3 = sbr.rel (0) target = $region5
  $region4: #{tile.26} parent=0 // pred_region
    _
  $region5: #{tile.26} parent=0 // pred_fallthru
    _
  %v4 = vld [vmem:[%s0] ss:$0 sm:$0xff]
  %5 = vst [vmem:[%s1] sm:$0xff] %v4
  %s6 = scalar_lea.vmem %s1, 8
  %7 = vst [vmem:[%s6] sm:$0xff] %v4

// kernel: separable_convolution.1
$region0: #{separable_convolution.1}
  #allocation0 [shape = 'u32[]', space=smem, size = 0x4, offset = 0x4, fixed_abs, tag = 'smem constant byte address 0x4 - core index']
  #allocation1 [shape = 'u32[144,128]{1,0:T(1,128)}', space=vmem, size = 0x12000, scoped, tag = 'internal scratch']
  %s0 = inlined_call_operand.vmem [shape: f32[2,1,18,128], index: 0, kind: input, shape index: {}]
  %s1 = inlined_call_operand.vmem [shape: f32[9,64], index: 1, kind: input, shape index: {}]
  %s2 = inlined_call_operand.vmem [shape: f32[1,64], index: 2, kind: input, shape index: {}]
  %s3 = inlined_call_operand.vmem [shape: bf16[64,128], index: 3, kind: input, shape index: {}]
  %s4 = inlined_call_operand.vmem [shape: f32[1,128], index: 4, kind: input, shape index: {}]
  %s5 = inlined_call_operand.vmem [shape: f32[2,1,16,128], index: 5, kind: output, shape index: {}]
  %s6 = sld [smem:[#allocation0]]
  $region53: #{separable_convolution.1} parent=0
    _
  %s8 = ssub.s32 1, %s6
  %s9 = scalar_select 0, %s8, %s6
  loop: start=0, step=1, limit=4
  $region2: #{separable_convolution.1} parent=0 // loop_pre_header
    _
  $region3: #{separable_convolution.1} parent=0 // loop_header
    %s11 = sphi 0, %s15
    %p12 = scmp.ge.s32.totalorder %s11, 4
    %s18 = sphi 0, %s30
    %s19 = sphi 0, %s26
    %s20 = sphi 0, %s18
    %s21 = sphi 0, %s19
    %s22 = sphi 0, %s20
    %s23 = sphi 0, %s21
    %s35 = sphi 0, %s37
    %s38 = sphi 0, %s35
    %s39 = sphi 0, %s38
    %s55 = sphi 0, %s39
    %s59 = sphi 0, %s59
    %s61 = sphi 0, %s59
    %s62 = sphi 0, %s61
    %s76 = sphi 0, %s62
    %s80 = sphi 0, %s80
    %s82 = sphi 0, %s80
    %s83 = sphi 0, %s82
    %s97 = sphi 0, %s83
    %s101 = sphi 0, %s101
    %s103 = sphi 0, %s101
    %s104 = sphi 0, %s103
    %s118 = sphi 0, %s104
    %s122 = sphi 0, %s122
    %s124 = sphi 0, %s122
    %s125 = sphi 0, %s124
    %s139 = sphi 0, %s125
    %s147 = sphi 0, %s149
    %s150 = sphi 0, %s147
    %s151 = sphi 0, %s150
    %s167 = sphi 0, %s151
  $region4: #{separable_convolution.1} parent=0 // loop_header_branch
    %14 = sbr.rel (%p12) target = $region8
  $region5: #{separable_convolution.1} parent=0 // loop_body
    %s16 = ssub.s32 %s11, 1
    %s17 = ssub.s32 %s11, 2
    %s24 = sadd.s32 1, %s19
    %p25 = scmp.ge.s32.totalorder %s24, 1
    %s26 = scalar_select %p25, 0, %s24
    %s27 = sadd.s32 1, %s18
    %s28 = scalar_select %p25, %s27, %s18
    %p29 = scmp.ge.s32.totalorder %s28, 2
    %s30 = scalar_select %p29, 0, %s28
    %s31 = ssub.s32 %s18, %s30
    %s32 = ssub.s32 %s19, %s26
    %s33 = sor.u32 %s31, %s32
    %p34 = scmp.eq.s32.totalorder %s33, 0
    %s36 = sadd.s32 %s35, 1
    %s37 = scalar_select %p34, %s35, %s36
    %p40 = pneg %p34
    %p41 = scmp.eq.s32.totalorder %s11, 1
    %p42 = por %p40, %p41
    %p43 = scmp.ne.s32.totalorder %s35, %s38
    %p44 = scmp.eq.s32.totalorder %s11, 0
    %p45 = por %p43, %p44
    %p46 = scmp.ne.s32.totalorder %s35, %s38
    %p47 = scmp.eq.s32.totalorder %s16, 1
    %p48 = por %p46, %p47
    %p49 = scmp.ne.s32.totalorder %s38, %s39
    %p50 = scmp.eq.s32.totalorder %s16, 0
    %p51 = por %p49, %p50
    %p52 = scmp.ne.s32.totalorder %s38, %s39
    %p53 = scmp.eq.s32.totalorder %s17, 1
    %p54 = por %p52, %p53
    %p56 = scmp.ne.s32.totalorder %s39, %s55
    %p57 = scmp.eq.s32.totalorder %s17, 0
    %p58 = por %p56, %p57
    %s60 = sadd.s32 %s59, 1
    %p63 = scmp.eq.s32.totalorder %s11, 1
    %p64 = scmp.ne.s32.totalorder %s59, %s61
    %p65 = scmp.eq.s32.totalorder %s11, 0
    %p66 = por %p64, %p65
    %p67 = scmp.ne.s32.totalorder %s59, %s61
    %p68 = scmp.eq.s32.totalorder %s16, 1
    %p69 = por %p67, %p68
    %p70 = scmp.ne.s32.totalorder %s61, %s62
    %p71 = scmp.eq.s32.totalorder %s16, 0
    %p72 = por %p70, %p71
    %p73 = scmp.ne.s32.totalorder %s61, %s62
    %p74 = scmp.eq.s32.totalorder %s17, 1
    %p75 = por %p73, %p74
    %p77 = scmp.ne.s32.totalorder %s62, %s76
    %p78 = scmp.eq.s32.totalorder %s17, 0
    %p79 = por %p77, %p78
    %s81 = sadd.s32 %s80, 1
    %p84 = scmp.eq.s32.totalorder %s11, 1
    %p85 = scmp.ne.s32.totalorder %s80, %s82
    %p86 = scmp.eq.s32.totalorder %s11, 0
    %p87 = por %p85, %p86
    %p88 = scmp.ne.s32.totalorder %s80, %s82
    %p89 = scmp.eq.s32.totalorder %s16, 1
    %p90 = por %p88, %p89
    %p91 = scmp.ne.s32.totalorder %s82, %s83
    %p92 = scmp.eq.s32.totalorder %s16, 0
    %p93 = por %p91, %p92
    %p94 = scmp.ne.s32.totalorder %s82, %s83
    %p95 = scmp.eq.s32.totalorder %s17, 1
    %p96 = por %p94, %p95
    %p98 = scmp.ne.s32.totalorder %s83, %s97
    %p99 = scmp.eq.s32.totalorder %s17, 0
    %p100 = por %p98, %p99
    %s102 = sadd.s32 %s101, 1
    %p105 = scmp.eq.s32.totalorder %s11, 1
    %p106 = scmp.ne.s32.totalorder %s101, %s103
    %p107 = scmp.eq.s32.totalorder %s11, 0
    %p108 = por %p106, %p107
    %p109 = scmp.ne.s32.totalorder %s101, %s103
    %p110 = scmp.eq.s32.totalorder %s16, 1
    %p111 = por %p109, %p110
    %p112 = scmp.ne.s32.totalorder %s103, %s104
    %p113 = scmp.eq.s32.totalorder %s16, 0
    %p114 = por %p112, %p113
    %p115 = scmp.ne.s32.totalorder %s103, %s104
    %p116 = scmp.eq.s32.totalorder %s17, 1
    %p117 = por %p115, %p116
    %p119 = scmp.ne.s32.totalorder %s104, %s118
    %p120 = scmp.eq.s32.totalorder %s17, 0
    %p121 = por %p119, %p120
    %s123 = sadd.s32 %s122, 1
    %p126 = scmp.eq.s32.totalorder %s11, 1
    %p127 = scmp.ne.s32.totalorder %s122, %s124
    %p128 = scmp.eq.s32.totalorder %s11, 0
    %p129 = por %p127, %p128
    %p130 = scmp.ne.s32.totalorder %s122, %s124
    %p131 = scmp.eq.s32.totalorder %s16, 1
    %p132 = por %p130, %p131
    %p133 = scmp.ne.s32.totalorder %s124, %s125
    %p134 = scmp.eq.s32.totalorder %s16, 0
    %p135 = por %p133, %p134
    %p136 = scmp.ne.s32.totalorder %s124, %s125
    %p137 = scmp.eq.s32.totalorder %s17, 1
    %p138 = por %p136, %p137
    %p140 = scmp.ne.s32.totalorder %s125, %s139
    %p141 = scmp.eq.s32.totalorder %s17, 0
    %p142 = por %p140, %p141
    %s143 = ssub.s32 %s18, %s30
    %s144 = ssub.s32 %s19, %s26
    %s145 = sor.u32 %s143, %s144
    %p146 = scmp.eq.s32.totalorder %s145, 0
    %s148 = sadd.s32 %s147, 1
    %s149 = scalar_select %p146, %s147, %s148
    %p152 = pneg %p146
    %p153 = scmp.eq.s32.totalorder %s11, 1
    %p154 = por %p152, %p153
    %p155 = scmp.ne.s32.totalorder %s147, %s150
    %p156 = scmp.eq.s32.totalorder %s11, 0
    %p157 = por %p155, %p156
    %p158 = scmp.ne.s32.totalorder %s147, %s150
    %p159 = scmp.eq.s32.totalorder %s16, 1
    %p160 = por %p158, %p159
    %p161 = scmp.ne.s32.totalorder %s150, %s151
    %p162 = scmp.eq.s32.totalorder %s16, 0
    %p163 = por %p161, %p162
    %p164 = scmp.ne.s32.totalorder %s150, %s151
    %p165 = scmp.eq.s32.totalorder %s17, 1
    %p166 = por %p164, %p165
    %p168 = scmp.ne.s32.totalorder %s151, %s167
    %p169 = scmp.eq.s32.totalorder %s17, 0
    %p170 = por %p168, %p169
    %p171 = scmp.le.s32.totalorder 1, %s11
    %p172 = scmp.lt.s32.totalorder %s11, 3
    %p173 = pnand %p171, %p172
    %p174 = pneg %p173
    // Predicated region
    $region9: #{separable_convolution.1} parent=5 // pred_check
      _
    $region10: #{separable_convolution.1} parent=5 // pred_check_branch
      %176 = sbr.rel (%p173) target = $region12
    $region11: #{separable_convolution.1} parent=5 // pred_region
      %s177 = ssub.s32 %s11, 1
      // Predicated region
      $region13: #{separable_convolution.1} parent=11 // pred_check
        %p178 = pneg %p72
      $region14: #{separable_convolution.1} parent=11 // pred_check_branch
        %180 = sbr.rel (%p178) target = $region16
      $region15: #{separable_convolution.1} parent=11 // pred_region
        _
      $region16: #{separable_convolution.1} parent=11 // pred_fallthru
        _
      // Predicated region
      $region17: #{separable_convolution.1} parent=11 // pred_check
        %p181 = pneg %p93
      $region18: #{separable_convolution.1} parent=11 // pred_check_branch
        %183 = sbr.rel (%p181) target = $region20
      $region19: #{separable_convolution.1} parent=11 // pred_region
        _
      $region20: #{separable_convolution.1} parent=11 // pred_fallthru
        _
      // Predicated region
      $region21: #{separable_convolution.1} parent=11 // pred_check
        %p184 = pneg %p114
      $region22: #{separable_convolution.1} parent=11 // pred_check_branch
        %186 = sbr.rel (%p184) target = $region24
      $region23: #{separable_convolution.1} parent=11 // pred_region
        _
      $region24: #{separable_convolution.1} parent=11 // pred_fallthru
        _
      // Predicated region
      $region25: #{separable_convolution.1} parent=11 // pred_check
        %p187 = pneg %p135
      $region26: #{separable_convolution.1} parent=11 // pred_check_branch
        %189 = sbr.rel (%p187) target = $region28
      $region27: #{separable_convolution.1} parent=11 // pred_region
        _
      $region28: #{separable_convolution.1} parent=11 // pred_fallthru
        _
    $region12: #{separable_convolution.1} parent=5 // pred_fallthru
      _
    %p190 = scmp.lt.s32.totalorder %s11, 2
    // Predicated region
    $region29: #{separable_convolution.1} parent=5 // pred_check
      %p191 = pneg %p190
    $region30: #{separable_convolution.1} parent=5 // pred_check_branch
      %193 = sbr.rel (%p191) target = $region32
    $region31: #{separable_convolution.1} parent=5 // pred_region
      // Predicated region
      $region33: #{separable_convolution.1} parent=31 // pred_check
        %p194 = pneg %p45
      $region34: #{separable_convolution.1} parent=31 // pred_check_branch
        %196 = sbr.rel (%p194) target = $region36
      $region35: #{separable_convolution.1} parent=31 // pred_region
        %p197 = scmp.lt.s32.totalorder %s18, 1
        %s198 = scalar_select %p197, %s18, 1
        %p199 = scmp.lt.s32.totalorder %s19, 0
        %s200 = scalar_select %p199, %s19, 0
        %s201 = smul.addr %s200, 3
        %s202 = smul.addr %s198, 3
        %s203 = sadd.s32 %s201, %s202
        %s204 = smul.addr %s203, 8
        %s205 = scalar_lea.vmem %s0, %s204
      $region36: #{separable_convolution.1} parent=31 // pred_fallthru
        _
    $region32: #{separable_convolution.1} parent=5 // pred_fallthru
      _
    %p206 = scmp.le.s32.totalorder 1, %s11
    %p207 = scmp.lt.s32.totalorder %s11, 3
    %p208 = pnand %p206, %p207
    %p209 = pneg %p208
    // Predicated region
    $region37: #{separable_convolution.1} parent=5 // pred_check
      _
    $region38: #{separable_convolution.1} parent=5 // pred_check_branch
      %211 = sbr.rel (%p208) target = $region40
    $region39: #{separable_convolution.1} parent=5 // pred_region
      %s212 = ssub.s32 %s11, 1
      %p213 = scmp.lt.s32.totalorder %s20, 1
      %s214 = scalar_select %p213, %s20, 1
      %p215 = scmp.lt.s32.totalorder %s21, 0
      %s216 = scalar_select %p215, %s21, 0
      %s217 = smul.addr %s216, 3
      %s218 = smul.addr %s214, 3
      %s219 = sadd.s32 %s217, %s218
      %s220 = smul.addr %s219, 8
      %s221 = scalar_lea.vmem %s0, %s220
      %p222 = pneg %p51
      %p223 = pneg %p48
      %p224 = pneg %p72
      %p225 = pneg %p69
      %p226 = pneg %p93
      %p227 = pneg %p90
      %p228 = pneg %p114
      %p229 = pneg %p111
      %p230 = pneg %p135
      %p231 = pneg %p132
      %p232 = pneg %p163
      %p233 = pneg %p160
      %p234 = scmp.lt.s32.totalorder %s20, 1
      %s235 = scalar_select %p234, %s20, 1
      %p236 = scmp.lt.s32.totalorder %s21, 0
      %s237 = scalar_select %p236, %s21, 0
      %s238 = smul.addr %s237, 2
      %s239 = smul.addr %s235, 2
      %s240 = sadd.s32 %s238, %s239
      %s241 = smul.addr %s240, 8
      %s242 = scalar_lea.vmem %s5, %s241
      %p243 = scmp.lt.s32.totalorder %s20, 1
      %s244 = scalar_select %p243, %s20, 1
      %p245 = scmp.lt.s32.totalorder %s21, 0
      %s246 = scalar_select %p245, %s21, 0
      %s247 = smul.addr %s246, 3
      %s248 = smul.addr %s244, 3
      %s249 = sadd.s32 %s247, %s248
      %s250 = smul.addr %s249, 8
      %s251 = scalar_lea.vmem %s0, %s250
      %p252 = scmp.lt.s32.totalorder %s20, 1
      %s253 = scalar_select %p252, %s20, 1
      %p254 = scmp.lt.s32.totalorder %s21, 0
      %s255 = scalar_select %p254, %s21, 0
      %s256 = smul.addr %s255, 2
      %s257 = smul.addr %s253, 2
      %s258 = sadd.s32 %s256, %s257
      %s259 = smul.addr %s258, 8
      %s260 = scalar_lea.vmem %s5, %s259
      %v262 = vld [vmem:[%s1] sm:$0xff]
      %v263 = vld [vmem:[%s1 + $0x8] sm:$0x1]
      %v264 = vld [vmem:[%s251] sm:$0xff]
      %v265 = vld [vmem:[%s251 + $0x8] sm:$0xff]
      %v266 = vld [vmem:[%s251 + $0x10] sm:$0x3]
      %v267 = vlaneseq
      %v268 = vshrl.u32 %v267, 7
      %v269 = vsub.s32 0, %v268
      %v270 = vrot.slane %v262, %v269
      %v271 = vmul.f32 %v264, %v270
      %v272 = vmul.f32 %v265, %v270
      %v273 = vlaneseq
      %v274 = vshrl.u32 %v273, 7
      %v275 = vsub.s32 1, %v274
      %v276 = vrot.slane %v262, %v275
      %278 = vrot.lane.b32.xlu0 %v276, 4
      %v279 = vpop.permute.xlu0 %278
      %v281 = vmul.f32 %v264, %v279
      %v282 = vmul.f32 %v265, %v279
      %285 = vrot.lane.b32.xlu0 %v281, 124
      %v286 = vpop.permute.xlu0 %285
      %287 = vrot.lane.b32.xlu0 %v282, 124
      %v288 = vpop.permute.xlu0 %287
      %v291 = vadd.f32 %v271, %v286
      %v292 = vadd.f32 %v272, %v288
      %v293 = vlaneseq
      %v294 = vshrl.u32 %v293, 7
      %v295 = vsub.s32 2, %v294
      %v296 = vrot.slane %v262, %v295
      %298 = vrot.lane.b32.xlu0 %v296, 8
      %v299 = vpop.permute.xlu0 %298
      %v301 = vmul.f32 %v264, %v299
      %v302 = vmul.f32 %v265, %v299
      %305 = vrot.lane.b32.xlu0 %v301, 120
      %v306 = vpop.permute.xlu0 %305
      %307 = vrot.lane.b32.xlu0 %v302, 120
      %v308 = vpop.permute.xlu0 %307
      %v311 = vadd.f32 %v291, %v306
      %v312 = vadd.f32 %v292, %v308
      %v313 = vlaneseq
      %v314 = vshrl.u32 %v313, 7
      %v315 = vsub.s32 3, %v314
      %v316 = vrot.slane %v262, %v315
      %v317 = vmul.f32 %v264, %v316
      %v318 = vmul.f32 %v265, %v316
      %v319 = vmul.f32 %v266, %v316
      %vm323 = vcmask 1046528
      %v324 = vrot.slane %v317, 1
      %v325 = vrot.slane %v318, 1
      %v326 = vsel %vm323, %v324, %v325
      %v327 = vrot.slane %v319, 1
      %v328 = vsel %vm323, %v325, %v327
      %v331 = vadd.f32 %v311, %v326
      %v332 = vadd.f32 %v312, %v328
      %v333 = vlaneseq
      %v334 = vshrl.u32 %v333, 7
      %v335 = vsub.s32 4, %v334
      %v336 = vrot.slane %v262, %v335
      %338 = vrot.lane.b32.xlu0 %v336, 4
      %v339 = vpop.permute.xlu0 %338
      %v341 = vmul.f32 %v264, %v339
      %v342 = vmul.f32 %v265, %v339
      %v343 = vmul.f32 %v266, %v339
      %v347 = vrot.slane %v341, 1
      %v348 = vrot.slane %v342, 1
      %v349 = vsel %vm323, %v347, %v348
      %v350 = vrot.slane %v343, 1
      %v351 = vsel %vm323, %v348, %v350
      %352 = vrot.lane.b32.xlu0 %v349, 124
      %v353 = vpop.permute.xlu0 %352
      %354 = vrot.lane.b32.xlu0 %v351, 124
      %v355 = vpop.permute.xlu0 %354
      %v358 = vadd.f32 %v331, %v353
      %v359 = vadd.f32 %v332, %v355
      %v360 = vlaneseq
      %v361 = vshrl.u32 %v360, 7
      %v362 = vsub.s32 5, %v361
      %v363 = vrot.slane %v262, %v362
      %365 = vrot.lane.b32.xlu0 %v363, 8
      %v366 = vpop.permute.xlu0 %365
      %v368 = vmul.f32 %v264, %v366
      %v369 = vmul.f32 %v265, %v366
      %v370 = vmul.f32 %v266, %v366
      %v374 = vrot.slane %v368, 1
      %v375 = vrot.slane %v369, 1
      %v376 = vsel %vm323, %v374, %v375
      %v377 = vrot.slane %v370, 1
      %v378 = vsel %vm323, %v375, %v377
      %379 = vrot.lane.b32.xlu0 %v376, 120
      %v380 = vpop.permute.xlu0 %379
      %381 = vrot.lane.b32.xlu0 %v378, 120
      %v382 = vpop.permute.xlu0 %381
      %v385 = vadd.f32 %v358, %v380
      %v386 = vadd.f32 %v359, %v382
      %v387 = vlaneseq
      %v388 = vshrl.u32 %v387, 7
      %v389 = vsub.s32 6, %v388
      %v390 = vrot.slane %v262, %v389
      %v391 = vmul.f32 %v264, %v390
      %v392 = vmul.f32 %v265, %v390
      %v393 = vmul.f32 %v266, %v390
      %vm397 = vcmask 1045504
      %v398 = vrot.slane %v391, 2
      %v399 = vrot.slane %v392, 2
      %v400 = vsel %vm397, %v398, %v399
      %v401 = vrot.slane %v393, 2
      %v402 = vsel %vm397, %v399, %v401
      %v405 = vadd.f32 %v385, %v400
      %v406 = vadd.f32 %v386, %v402
      %v407 = vlaneseq
      %v408 = vshrl.u32 %v407, 7
      %v409 = vsub.s32 7, %v408
      %v410 = vrot.slane %v262, %v409
      %412 = vrot.lane.b32.xlu0 %v410, 4
      %v413 = vpop.permute.xlu0 %412
      %v415 = vmul.f32 %v264, %v413
      %v416 = vmul.f32 %v265, %v413
      %v417 = vmul.f32 %v266, %v413
      %v421 = vrot.slane %v415, 2
      %v422 = vrot.slane %v416, 2
      %v423 = vsel %vm397, %v421, %v422
      %v424 = vrot.slane %v417, 2
      %v425 = vsel %vm397, %v422, %v424
      %426 = vrot.lane.b32.xlu0 %v423, 124
      %v427 = vpop.permute.xlu0 %426
      %428 = vrot.lane.b32.xlu0 %v425, 124
      %v429 = vpop.permute.xlu0 %428
      %v432 = vadd.f32 %v405, %v427
      %v433 = vadd.f32 %v406, %v429
      %v434 = vlaneseq
      %v435 = vshrl.u32 %v434, 7
      %v436 = vsub.s32 0, %v435
      %v437 = vrot.slane %v263, %v436
      %439 = vrot.lane.b32.xlu0 %v437, 8
      %v440 = vpop.permute.xlu0 %439
      %v442 = vmul.f32 %v264, %v440
      %v443 = vmul.f32 %v265, %v440
      %v444 = vmul.f32 %v266, %v440
      %v448 = vrot.slane %v442, 2
      %v449 = vrot.slane %v443, 2
      %v450 = vsel %vm397, %v448, %v449
      %v451 = vrot.slane %v444, 2
      %v452 = vsel %vm397, %v449, %v451
      %453 = vrot.lane.b32.xlu0 %v450, 120
      %v454 = vpop.permute.xlu0 %453
      %455 = vrot.lane.b32.xlu0 %v452, 120
      %v456 = vpop.permute.xlu0 %455
      %v459 = vadd.f32 %v432, %v454
      %v460 = vadd.f32 %v433, %v456
      %v461 = vld [vmem:[%s2] sm:$0x1]
      %v463 = vlaneseq
      %v464 = vshrl.u32 %v463, 7
      %v465 = vsub.s32 0, %v464
      %v466 = vrot.slane %v461, %v465
      %v468 = vadd.f32 %v459, %v466
      %v469 = vadd.f32 %v460, %v466
      %v470 = vmin.f32 %v468, 20.0
      %v471 = vmin.f32 %v469, 20.0
      %v472 = vmul.f32 %v470, 1.442695
      %v473 = vpow.pop %v472
      %v474 = vmul.f32 %v471, 1.442695
      %v475 = vpow.pop %v474
      %v476 = vadd.f32 %v473, 1.0
      %v477 = vadd.f32 %v475, 1.0
      %v478 = vmul.f32 %v476, %v476
      %v479 = vmul.f32 %v477, %v477
      %v480 = vsub.f32 %v478, 1.0
      %v481 = vsub.f32 %v479, 1.0
      %v482 = vmul.f32 %v468, %v480
      %v483 = vmul.f32 %v469, %v481
      %v484 = vadd.f32 %v478, 1.0
      %v485 = vadd.f32 %v479, 1.0
      %v486 = vrcp.pop %v484
      %v487 = vrcp.pop %v485
      %v488 = vmul.f32 %v482, %v486
      %v489 = vmul.f32 %v483, %v487
      %v490 = vpack.c.bf16 %v489, %v488
      %v491 = vld [vmem:[%s3] sm:$0xf]
      %v492 = vld [vmem:[%s3 + $0x4] sm:$0xf]
      %v493 = vld [vmem:[%s3 + $0x8] sm:$0xf]
      %v494 = vld [vmem:[%s3 + $0xc] sm:$0xf]
      %v495 = vld [vmem:[%s3 + $0x10] sm:$0xf]
      %v496 = vld [vmem:[%s3 + $0x14] sm:$0xf]
      %v497 = vld [vmem:[%s3 + $0x18] sm:$0xf]
      %v498 = vld [vmem:[%s3 + $0x1c] sm:$0xf]
      %v499 = vld [vmem:[%s4] sm:$0x1]
      %v501 = vlaneseq
      %v502 = vshrl.u32 %v501, 7
      %v503 = vsub.s32 0, %v502
      %v504 = vrot.slane %v499, %v503
      %v514 = vunpack.c.l.b16 %v491
      %v515 = vunpack.c.l.b16 %v492
      %v516 = vunpack.c.l.b16 %v493
      %v517 = vunpack.c.l.b16 %v494
      %v518 = vunpack.c.l.b16 %v495
      %v519 = vunpack.c.l.b16 %v496
      %v520 = vunpack.c.l.b16 %v497
      %v521 = vunpack.c.l.b16 %v498
      %v522 = vpack.c.b16 %v515, %v514
      %v523 = vpack.c.b16 %v517, %v516
      %v524 = vpack.c.b16 %v519, %v518
      %v525 = vpack.c.b16 %v521, %v520
      %vm530 = vcmask 523264
      %v532 = vsel %vm530, %v490, 0
      %534 = vmatprep.subr.bf16.mxu0 0
      %535 = vmatpush1.bf16.msra.mxu0 0
      %536 = vmatprep.subr.bf16.mxu0 0
      %537 = vmatpush1.bf16.msra.mxu0 0
      %538 = vmatprep.subr.bf16.mxu0 0
      %539 = vmatpush1.bf16.msra.mxu0 0
      %540 = vmatprep.subr.bf16.mxu0 0
      %541 = vmatpush1.bf16.msra.mxu0 0
      %542 = vmatprep.subr.bf16.mxu0 0
      %543 = vmatpush1.bf16.msra.mxu0 %v525
      %544 = vmatprep.subr.bf16.mxu0 0
      %545 = vmatpush1.bf16.msra.mxu0 %v524
      %546 = vmatprep.subr.bf16.mxu0 0
      %547 = vmatpush1.bf16.msra.mxu0 %v523
      %548 = vmatprep.subr.bf16.mxu0 0
      %549 = vmatpush1.bf16.msra.mxu0 %v522
      %550 = vmatprep.subr.bf16.mxu0 0
      %551 = vmatpush2.bf16.msra.mxu0 0
      %552 = vmatprep.subr.bf16.mxu0 0
      %553 = vmatpush2.bf16.msra.mxu0 0
      %554 = vmatprep.subr.bf16.mxu0 0
      %555 = vmatpush2.bf16.msra.mxu0 0
      %556 = vmatprep.subr.bf16.mxu0 0
      %557 = vmatpush2.bf16.msra.mxu0 0
      %558 = vmatprep.subr.bf16.mxu0 0
      %559 = vmatpush2.bf16.msra.mxu0 0
      %560 = vmatprep.subr.bf16.mxu0 0
      %561 = vmatpush2.bf16.msra.mxu0 0
      %562 = vmatprep.subr.bf16.mxu0 0
      %563 = vmatpush2.bf16.msra.mxu0 0
      %564 = vmatprep.subr.bf16.mxu0 0
      %565 = vmatpush2.bf16.msra.mxu0 0
      %566 = vmatprep.mubr.bf16.mxu0 0
      %567 = vmatmul.mubr.bf16.gmra.mxu0 %v532
      %v568 = vpop.f32.mrf.mxu0
      %v569 = vadd.f32 %v504, %v568
      %v570 = vpop.f32.mrf.mxu0
      %v571 = vpop.f32.mrf.mxu0
      %v572 = vadd.f32 %v504, %v571
      %v573 = vpop.f32.mrf.mxu0
      %574 = vdwg.mxu0
      %575 = vst [vmem:[%s260] sm:$0xff] %v569
      %576 = vst [vmem:[%s260 + $0x8] sm:$0xff] %v572
      %p577 = scmp.lt.s32.totalorder %s20, 1
      %s578 = scalar_select %p577, %s20, 1
      %p579 = scmp.lt.s32.totalorder %s21, 0
      %s580 = scalar_select %p579, %s21, 0
      %s581 = smul.addr %s580, 2
      %s582 = smul.addr %s578, 2
      %s583 = sadd.s32 %s581, %s582
      %s584 = smul.addr %s583, 8
      %s585 = scalar_lea.vmem %s5, %s584
      // Predicated region
      $region41: #{separable_convolution.1} parent=39 // pred_check
        %p586 = pneg %p160
      $region42: #{separable_convolution.1} parent=39 // pred_check_branch
        %588 = sbr.rel (%p586) target = $region44
      $region43: #{separable_convolution.1} parent=39 // pred_region
        _
      $region44: #{separable_convolution.1} parent=39 // pred_fallthru
        _
    $region40: #{separable_convolution.1} parent=5 // pred_fallthru
      _
    %p589 = scmp.le.s32.totalorder 2, %s11
    // Predicated region
    $region45: #{separable_convolution.1} parent=5 // pred_check
      %p590 = pneg %p589
    $region46: #{separable_convolution.1} parent=5 // pred_check_branch
      %592 = sbr.rel (%p590) target = $region48
    $region47: #{separable_convolution.1} parent=5 // pred_region
      %s593 = ssub.s32 %s11, 2
      // Predicated region
      $region49: #{separable_convolution.1} parent=47 // pred_check
        %p594 = pneg %p166
      $region50: #{separable_convolution.1} parent=47 // pred_check_branch
        %596 = sbr.rel (%p594) target = $region52
      $region51: #{separable_convolution.1} parent=47 // pred_region
        %p597 = scmp.lt.s32.totalorder %s22, 1
        %s598 = scalar_select %p597, %s22, 1
        %p599 = scmp.lt.s32.totalorder %s23, 0
        %s600 = scalar_select %p599, %s23, 0
        %s601 = smul.addr %s600, 2
        %s602 = smul.addr %s598, 2
        %s603 = sadd.s32 %s601, %s602
        %s604 = smul.addr %s603, 8
        %s605 = scalar_lea.vmem %s5, %s604
      $region52: #{separable_convolution.1} parent=47 // pred_fallthru
        _
    $region48: #{separable_convolution.1} parent=5 // pred_fallthru
      _
  $region6: #{separable_convolution.1} parent=0 // loop_footer
    %s15 = sadd.s32 1, %s11
  $region7: #{separable_convolution.1} parent=0 // loop_footer_branch
    %10 = sbr.rel target = $region3
  $region8: #{separable_convolution.1} parent=0 // loop_exit
    _

</llo_original>
